<compile_context>
chip_gen: v6e
topology: v6e:2x2x1
jax: 0.10.0
libtpu: 0.0.40
codegen_flags: <defaults>
</compile_context>

<pallas_src>
import functools

import jax
import jax.numpy as jnp
from jax import lax
from jax.experimental import pallas as pl
from jax.experimental.pallas import tpu as pltpu


_PAIRS = ((0, 0), (0, 1), (1, 0), (1, 1))


def _phase_conv_kernel(x_ref, w_ref, b_ref, o_ref, *, wp):
    """One batch element per grid step.

    x_ref : (1, Min, C)    bf16 zero-padded input, rows flattened, Min=(h+3)*wp
    w_ref : (C, 16*C)      bf16 phase/tap-stacked conv weights
    b_ref : (1, C)         f32  conv bias
    o_ref : (1, Mout, 4*C) f32  Mout = h*wp; last dim is phase-major (4 phases x C)
    """
    mout = o_ref.shape[1]
    cout = b_ref.shape[1]

    # One big MXU matmul: every (phase, tap) channel block at every padded pixel.
    x = x_ref[0]                                                    # (Min, C) bf16
    prod = jnp.dot(x, w_ref[...],
                   preferred_element_type=jnp.float32)              # (Min, 16*C) f32

    bias = b_ref[...]                                               # (1, C) f32
    phase_out = []
    for p_idx, (py, px) in enumerate(_PAIRS):                       # output phase
        acc = jnp.broadcast_to(bias, (mout, cout))                  # bias-init acc
        for t_idx, (ry, rx) in enumerate(_PAIRS):                   # 2x2 tap
            blk = p_idx * 4 + t_idx
            shift = (py + ry) * wp + (px + rx)                      # 2-D shift, flat
            acc = acc + prod[shift:shift + mout,
                             blk * cout:(blk + 1) * cout]
        phase_out.append(jnp.maximum(acc, 0.2 * acc))               # LeakyReLU(0.2)

    o_ref[0] = jnp.concatenate(phase_out, axis=-1).astype(o_ref.dtype)


def eupsample_block(x_nchw, weight_oihw, bias):
    """Forward pass of EUpsampleBlock: (N,C,h,w) f32 -> (N,C,2h,2w) f32."""
    N, C, h, w = x_nchw.shape
    wp = w + 2                       # padded width (left + right zero column)
    min_rows = (h + 3) * wp          # padded rows: 1 top, 1 halo bottom, 1 slack
    mout = h * wp

    # --- glue at ORIGINAL resolution only: NCHW->NHWC, zero-pad, flatten, bf16 ---
    x_nhwc = jnp.transpose(x_nchw, (0, 2, 3, 1))                    # (N,h,w,C)
    x_pad = jnp.pad(x_nhwc, ((0, 0), (1, 2), (1, 1), (0, 0)))       # (N,h+3,w+2,C)
    x_flat = x_pad.reshape(N, min_rows, C).astype(jnp.bfloat16)

    # --- fold the nearest-x2 upsample into the conv weights (phase decomposition):
    #     phase 0: kernel row {0} -> tap 0, rows {1,2} -> tap 1
    #     phase 1: kernel rows {0,1} -> tap 0, row {2} -> tap 1   (same for columns)
    w_hwio = jnp.transpose(weight_oihw, (2, 3, 1, 0)).astype(jnp.float32)  # (3,3,Ci,Co)
    amap = jnp.array([[[1., 0., 0.], [0., 1., 1.]],
                      [[1., 1., 0.], [0., 0., 1.]]], dtype=jnp.float32)    # (ph,tap,k)
    kph = jnp.einsum('prk,qsl,klio->pqrsio', amap, amap, w_hwio)    # (py,px,ry,rx,Ci,Co)
    w_all = jnp.transpose(kph, (4, 0, 1, 2, 3, 5)).reshape(C, 16 * C)
    w_all = w_all.astype(jnp.bfloat16)
    b2d = bias.reshape(1, C).astype(jnp.float32)

    kernel = functools.partial(_phase_conv_kernel, wp=wp)
    out_flat = pl.pallas_call(
        kernel,
        out_shape=jax.ShapeDtypeStruct((N, mout, 4 * C), jnp.float32),
        grid_spec=pltpu.PrefetchScalarGridSpec(
            num_scalar_prefetch=0,
            grid=(N,),
            in_specs=[
                pl.BlockSpec((1, min_rows, C), lambda n: (n, 0, 0)),
                pl.BlockSpec((C, 16 * C), lambda n: (0, 0)),
                pl.BlockSpec((1, C), lambda n: (0, 0)),
            ],
            out_specs=pl.BlockSpec((1, mout, 4 * C), lambda n: (n, 0, 0)),
        ),
        compiler_params=pltpu.CompilerParams(
            dimension_semantics=("parallel",),
            vmem_limit_bytes=64 * 1024 * 1024),
    )(x_flat, w_all, b2d)

    # --- un-flatten and interleave the 4 phases back to NCHW at 2x resolution ---
    y = out_flat.reshape(N, h, wp, 2, 2, C)[:, :, :w]               # drop pad columns
    y = jnp.transpose(y, (0, 5, 1, 3, 2, 4))                        # (N,C,h,2,w,2)
    return y.reshape(N, C, 2 * h, 2 * w).astype(x_nchw.dtype)


def _reference(x_nchw, weight_oihw, bias):
    """Pure-JAX f32 reference (upsample + conv + LeakyReLU) for validation."""
    x_up = jnp.repeat(jnp.repeat(x_nchw, 2, axis=2), 2, axis=3)
    y = lax.conv_general_dilated(
        x_up, weight_oihw, window_strides=(1, 1), padding="SAME",
        dimension_numbers=("NCHW", "OIHW", "NCHW"))
    y = y + bias.reshape(1, -1, 1, 1)
    return jnp.where(y >= 0, y, 0.2 * y)


if __name__ == "__main__":
    key = jax.random.PRNGKey(0)
    k_x, k_w, k_b = jax.random.split(key, 3)

    N, C, h, w = 2, 4, 8, 8                      # input spatial 8 -> output 16
    x = jax.random.normal(k_x, (N, C, h, w), dtype=jnp.float32)

    # Deterministic synthetic Conv2d(C, C, 3, 3) parameters.
    fan_in = C * 3 * 3
    bound = 1.0 / jnp.sqrt(jnp.float32(fan_in))
    weight = jax.random.uniform(k_w, (C, C, 3, 3), dtype=jnp.float32,
                                minval=-bound, maxval=bound)
    bias = jax.random.uniform(k_b, (C,), dtype=jnp.float32,
                              minval=-bound, maxval=bound)

    out = jax.block_until_ready(eupsample_block(x, weight, bias))
    ref = _reference(x, weight, bias)

    assert out.shape == (N, C, 2 * h, 2 * w), out.shape
    # bf16 MXU inputs -> loosened tolerance vs. the f32 reference.
    max_err = float(jnp.max(jnp.abs(out - ref)))
    assert jnp.allclose(out, ref, atol=7e-2, rtol=5e-2), max_err

    print("KERNEL_OK")
</pallas_src>

<mosaic_0001>
module attributes {stable_mosaic.version = 11 : i64} {
  func.func @_phase_conv_kernel(%arg0: i32, %arg1: memref<1x110x4xbf16, #tpu.memory_space<vmem>>, %arg2: memref<4x64xbf16, #tpu.memory_space<vmem>>, %arg3: memref<1x4xf32, #tpu.memory_space<vmem>>, %arg4: memref<1x80x16xf32, #tpu.memory_space<vmem>>) attributes {dimension_semantics = [#tpu.dimension_semantics<parallel>], iteration_bounds = array<i64: 2>, scalar_prefetch = 0 : i64, scratch_operands = 0 : i64, tpu.core_type = #tpu.core_type<tc>, window_params = [{transform_indices = @transform_0, window_bounds = array<i64: 1, 110, 4>}, {pipeline_mode = #tpu.pipeline_mode<synchronous>, transform_indices = @transform_1, window_bounds = array<i64: 4, 64>}, {pipeline_mode = #tpu.pipeline_mode<synchronous>, transform_indices = @transform_2, window_bounds = array<i64: 1, 4>}, {transform_indices = @transform_3, window_bounds = array<i64: 1, 80, 16>}]} {
    %c0 = arith.constant 0 : index
    %c0_0 = arith.constant 0 : index
    %c0_1 = arith.constant 0 : index
    %0 = vector.load %arg1[%c0, %c0_0, %c0_1] : memref<1x110x4xbf16, #tpu.memory_space<vmem>>, vector<1x110x4xbf16>
    %1 = vector.shape_cast %0 : vector<1x110x4xbf16> to vector<110x4xbf16>
    %c0_2 = arith.constant 0 : index
    %c0_3 = arith.constant 0 : index
    %2 = vector.load %arg2[%c0_2, %c0_3] : memref<4x64xbf16, #tpu.memory_space<vmem>>, vector<4x64xbf16>
    %cst = arith.constant dense<0.000000e+00> : vector<110x64xf32>
    %3 = tpu.matmul %1, %2, %cst {dimension_numbers = #tpu.dot_dimension_numbers<[1], [0], [0], [1], [0, 0, 1, 1], [], []>} : vector<110x4xbf16>, vector<4x64xbf16>, vector<110x64xf32> -> vector<110x64xf32>
    %c0_4 = arith.constant 0 : index
    %c0_5 = arith.constant 0 : index
    %4 = vector.load %arg3[%c0_4, %c0_5] : memref<1x4xf32, #tpu.memory_space<vmem>>, vector<1x4xf32>
    %5 = vector.shape_cast %4 : vector<1x4xf32> to vector<1x4xf32>
    %6 = vector.broadcast %5 : vector<1x4xf32> to vector<80x4xf32>
    %7 = vector.extract_strided_slice %3 {offsets = [0, 0], sizes = [80, 4], strides = [1, 1]} : vector<110x64xf32> to vector<80x4xf32>
    %8 = arith.addf %6, %7 : vector<80x4xf32>
    %9 = vector.extract_strided_slice %3 {offsets = [1, 4], sizes = [80, 4], strides = [1, 1]} : vector<110x64xf32> to vector<80x4xf32>
    %10 = arith.addf %8, %9 : vector<80x4xf32>
    %11 = vector.extract_strided_slice %3 {offsets = [10, 8], sizes = [80, 4], strides = [1, 1]} : vector<110x64xf32> to vector<80x4xf32>
    %12 = arith.addf %10, %11 : vector<80x4xf32>
    %13 = vector.extract_strided_slice %3 {offsets = [11, 12], sizes = [80, 4], strides = [1, 1]} : vector<110x64xf32> to vector<80x4xf32>
    %14 = arith.addf %12, %13 : vector<80x4xf32>
    %cst_6 = arith.constant 2.000000e-01 : f32
    %15 = vector.broadcast %cst_6 : f32 to vector<80x4xf32>
    %16 = arith.mulf %15, %14 : vector<80x4xf32>
    %17 = arith.maximumf %14, %16 : vector<80x4xf32>
    %18 = vector.shape_cast %4 : vector<1x4xf32> to vector<1x4xf32>
    %19 = vector.broadcast %18 : vector<1x4xf32> to vector<80x4xf32>
    %20 = vector.extract_strided_slice %3 {offsets = [1, 16], sizes = [80, 4], strides = [1, 1]} : vector<110x64xf32> to vector<80x4xf32>
    %21 = arith.addf %19, %20 : vector<80x4xf32>
    %22 = vector.extract_strided_slice %3 {offsets = [2, 20], sizes = [80, 4], strides = [1, 1]} : vector<110x64xf32> to vector<80x4xf32>
    %23 = arith.addf %21, %22 : vector<80x4xf32>
    %24 = vector.extract_strided_slice %3 {offsets = [11, 24], sizes = [80, 4], strides = [1, 1]} : vector<110x64xf32> to vector<80x4xf32>
    %25 = arith.addf %23, %24 : vector<80x4xf32>
    %26 = vector.extract_strided_slice %3 {offsets = [12, 28], sizes = [80, 4], strides = [1, 1]} : vector<110x64xf32> to vector<80x4xf32>
    %27 = arith.addf %25, %26 : vector<80x4xf32>
    %cst_7 = arith.constant 2.000000e-01 : f32
    %28 = vector.broadcast %cst_7 : f32 to vector<80x4xf32>
    %29 = arith.mulf %28, %27 : vector<80x4xf32>
    %30 = arith.maximumf %27, %29 : vector<80x4xf32>
    %31 = vector.shape_cast %4 : vector<1x4xf32> to vector<1x4xf32>
    %32 = vector.broadcast %31 : vector<1x4xf32> to vector<80x4xf32>
    %33 = vector.extract_strided_slice %3 {offsets = [10, 32], sizes = [80, 4], strides = [1, 1]} : vector<110x64xf32> to vector<80x4xf32>
    %34 = arith.addf %32, %33 : vector<80x4xf32>
    %35 = vector.extract_strided_slice %3 {offsets = [11, 36], sizes = [80, 4], strides = [1, 1]} : vector<110x64xf32> to vector<80x4xf32>
    %36 = arith.addf %34, %35 : vector<80x4xf32>
    %37 = vector.extract_strided_slice %3 {offsets = [20, 40], sizes = [80, 4], strides = [1, 1]} : vector<110x64xf32> to vector<80x4xf32>
    %38 = arith.addf %36, %37 : vector<80x4xf32>
    %39 = vector.extract_strided_slice %3 {offsets = [21, 44], sizes = [80, 4], strides = [1, 1]} : vector<110x64xf32> to vector<80x4xf32>
    %40 = arith.addf %38, %39 : vector<80x4xf32>
    %cst_8 = arith.constant 2.000000e-01 : f32
    %41 = vector.broadcast %cst_8 : f32 to vector<80x4xf32>
    %42 = arith.mulf %41, %40 : vector<80x4xf32>
    %43 = arith.maximumf %40, %42 : vector<80x4xf32>
    %44 = vector.shape_cast %4 : vector<1x4xf32> to vector<1x4xf32>
    %45 = vector.broadcast %44 : vector<1x4xf32> to vector<80x4xf32>
    %46 = vector.extract_strided_slice %3 {offsets = [11, 48], sizes = [80, 4], strides = [1, 1]} : vector<110x64xf32> to vector<80x4xf32>
    %47 = arith.addf %45, %46 : vector<80x4xf32>
    %48 = vector.extract_strided_slice %3 {offsets = [12, 52], sizes = [80, 4], strides = [1, 1]} : vector<110x64xf32> to vector<80x4xf32>
    %49 = arith.addf %47, %48 : vector<80x4xf32>
    %50 = vector.extract_strided_slice %3 {offsets = [21, 56], sizes = [80, 4], strides = [1, 1]} : vector<110x64xf32> to vector<80x4xf32>
    %51 = arith.addf %49, %50 : vector<80x4xf32>
    %52 = vector.extract_strided_slice %3 {offsets = [22, 60], sizes = [80, 4], strides = [1, 1]} : vector<110x64xf32> to vector<80x4xf32>
    %53 = arith.addf %51, %52 : vector<80x4xf32>
    %cst_9 = arith.constant 2.000000e-01 : f32
    %54 = vector.broadcast %cst_9 : f32 to vector<80x4xf32>
    %55 = arith.mulf %54, %53 : vector<80x4xf32>
    %56 = arith.maximumf %53, %55 : vector<80x4xf32>
    %57 = tpu.concatenate %17, %30, %43, %56 in 1 : vector<80x4xf32>, vector<80x4xf32>, vector<80x4xf32>, vector<80x4xf32> -> vector<80x16xf32>
    %c0_10 = arith.constant 0 : index
    %c0_11 = arith.constant 0 : index
    %c0_12 = arith.constant 0 : index
    %58 = vector.load %arg4[%c0_10, %c0_11, %c0_12] : memref<1x80x16xf32, #tpu.memory_space<vmem>>, vector<1x80x16xf32>
    %59 = vector.shape_cast %58 : vector<1x80x16xf32> to vector<80x16xf32>
    %60 = vector.shape_cast %57 : vector<80x16xf32> to vector<1x80x16xf32>
    tpu.vector_store %arg4[%c0_10, %c0_11, %c0_12], %60 {strides = array<i32>} : memref<1x80x16xf32, #tpu.memory_space<vmem>>, vector<1x80x16xf32>,
    return
  }
  func.func @transform_0(%arg0: i32) -> (i32, i32, i32) {
    %c0_i32 = arith.constant 0 : i32
    %c0_i32_0 = arith.constant 0 : i32
    %c0_i32_1 = arith.constant 0 : i32
    return %arg0, %c0_i32, %c0_i32_0 : i32, i32, i32
  }
  func.func @transform_1(%arg0: i32) -> (i32, i32) {
    %c0_i32 = arith.constant 0 : i32
    %c0_i32_0 = arith.constant 0 : i32
    %c0_i32_1 = arith.constant 0 : i32
    return %c0_i32, %c0_i32_0 : i32, i32
  }
  func.func @transform_2(%arg0: i32) -> (i32, i32) {
    %c0_i32 = arith.constant 0 : i32
    %c0_i32_0 = arith.constant 0 : i32
    %c0_i32_1 = arith.constant 0 : i32
    return %c0_i32, %c0_i32_0 : i32, i32
  }
  func.func @transform_3(%arg0: i32) -> (i32, i32, i32) {
    %c0_i32 = arith.constant 0 : i32
    %c0_i32_0 = arith.constant 0 : i32
    %c0_i32_1 = arith.constant 0 : i32
    return %arg0, %c0_i32, %c0_i32_0 : i32, i32, i32
  }
}

</mosaic_0001>

<llo_original>
// kernel: tpu_custom_call.1
$region0: #{tpu_custom_call.1}
  #allocation0 [shape = 'u32[]', space=smem, size = 0x4, offset = 0x4, fixed_abs, tag = 'smem constant byte address 0x4 - core index']
  #allocation1 [shape = 'u32[144,128]{1,0:T(1,128)}', space=vmem, size = 0x12000, scoped, tag = 'internal scratch']
  %s0 = inlined_call_operand.vmem [shape: bf16[2,110,4], index: 0, kind: input, shape index: {}]
  %s1 = inlined_call_operand.vmem [shape: bf16[4,64], index: 1, kind: input, shape index: {}]
  %s2 = inlined_call_operand.vmem [shape: f32[1,4], index: 2, kind: input, shape index: {}]
  %s3 = inlined_call_operand.vmem [shape: f32[2,80,16], index: 3, kind: output, shape index: {}]
  %s4 = sld [smem:[#allocation0]]
  $region45: #{tpu_custom_call.1} parent=0
    _
  %s6 = ssub.s32 1, %s4
  %s7 = scalar_select 0, %s6, %s4
  loop: start=0, step=1, limit=4
  $region2: #{tpu_custom_call.1} parent=0 // loop_pre_header
    _
  $region3: #{tpu_custom_call.1} parent=0 // loop_header
    %s9 = sphi 0, %s13
    %p10 = scmp.ge.s32.totalorder %s9, 4
    %s19 = sphi 0, %s21
    %s22 = sphi 0, %s19
    %s23 = sphi 0, %s22
    %s39 = sphi 0, %s23
    %s43 = sphi 0, %s43
    %s45 = sphi 0, %s43
    %s46 = sphi 0, %s45
    %s60 = sphi 0, %s46
    %s64 = sphi 0, %s64
    %s66 = sphi 0, %s64
    %s67 = sphi 0, %s66
    %s81 = sphi 0, %s67
    %s87 = sphi 0, %s89
    %s90 = sphi 0, %s87
    %s91 = sphi 0, %s90
    %s107 = sphi 0, %s91
  $region4: #{tpu_custom_call.1} parent=0 // loop_header_branch
    %12 = sbr.rel (%p10) target = $region8
  $region5: #{tpu_custom_call.1} parent=0 // loop_body
    %s14 = ssub.s32 %s9, 1
    %s15 = ssub.s32 %s9, 2
    %s16 = sadd.s32 %s9, 1
    %s17 = ssub.s32 %s9, %s16
    %p18 = scmp.eq.s32.totalorder %s17, 0
    %s20 = sadd.s32 %s19, 1
    %s21 = scalar_select %p18, %s19, %s20
    %p24 = pneg %p18
    %p25 = scmp.eq.s32.totalorder %s9, 1
    %p26 = por %p24, %p25
    %p27 = scmp.ne.s32.totalorder %s19, %s22
    %p28 = scmp.eq.s32.totalorder %s9, 0
    %p29 = por %p27, %p28
    %p30 = scmp.ne.s32.totalorder %s19, %s22
    %p31 = scmp.eq.s32.totalorder %s14, 1
    %p32 = por %p30, %p31
    %p33 = scmp.ne.s32.totalorder %s22, %s23
    %p34 = scmp.eq.s32.totalorder %s14, 0
    %p35 = por %p33, %p34
    %p36 = scmp.ne.s32.totalorder %s22, %s23
    %p37 = scmp.eq.s32.totalorder %s15, 1
    %p38 = por %p36, %p37
    %p40 = scmp.ne.s32.totalorder %s23, %s39
    %p41 = scmp.eq.s32.totalorder %s15, 0
    %p42 = por %p40, %p41
    %s44 = sadd.s32 %s43, 1
    %p47 = scmp.eq.s32.totalorder %s9, 1
    %p48 = scmp.ne.s32.totalorder %s43, %s45
    %p49 = scmp.eq.s32.totalorder %s9, 0
    %p50 = por %p48, %p49
    %p51 = scmp.ne.s32.totalorder %s43, %s45
    %p52 = scmp.eq.s32.totalorder %s14, 1
    %p53 = por %p51, %p52
    %p54 = scmp.ne.s32.totalorder %s45, %s46
    %p55 = scmp.eq.s32.totalorder %s14, 0
    %p56 = por %p54, %p55
    %p57 = scmp.ne.s32.totalorder %s45, %s46
    %p58 = scmp.eq.s32.totalorder %s15, 1
    %p59 = por %p57, %p58
    %p61 = scmp.ne.s32.totalorder %s46, %s60
    %p62 = scmp.eq.s32.totalorder %s15, 0
    %p63 = por %p61, %p62
    %s65 = sadd.s32 %s64, 1
    %p68 = scmp.eq.s32.totalorder %s9, 1
    %p69 = scmp.ne.s32.totalorder %s64, %s66
    %p70 = scmp.eq.s32.totalorder %s9, 0
    %p71 = por %p69, %p70
    %p72 = scmp.ne.s32.totalorder %s64, %s66
    %p73 = scmp.eq.s32.totalorder %s14, 1
    %p74 = por %p72, %p73
    %p75 = scmp.ne.s32.totalorder %s66, %s67
    %p76 = scmp.eq.s32.totalorder %s14, 0
    %p77 = por %p75, %p76
    %p78 = scmp.ne.s32.totalorder %s66, %s67
    %p79 = scmp.eq.s32.totalorder %s15, 1
    %p80 = por %p78, %p79
    %p82 = scmp.ne.s32.totalorder %s67, %s81
    %p83 = scmp.eq.s32.totalorder %s15, 0
    %p84 = por %p82, %p83
    %s85 = ssub.s32 %s9, %s16
    %p86 = scmp.eq.s32.totalorder %s85, 0
    %s88 = sadd.s32 %s87, 1
    %s89 = scalar_select %p86, %s87, %s88
    %p92 = pneg %p86
    %p93 = scmp.eq.s32.totalorder %s9, 1
    %p94 = por %p92, %p93
    %p95 = scmp.ne.s32.totalorder %s87, %s90
    %p96 = scmp.eq.s32.totalorder %s9, 0
    %p97 = por %p95, %p96
    %p98 = scmp.ne.s32.totalorder %s87, %s90
    %p99 = scmp.eq.s32.totalorder %s14, 1
    %p100 = por %p98, %p99
    %p101 = scmp.ne.s32.totalorder %s90, %s91
    %p102 = scmp.eq.s32.totalorder %s14, 0
    %p103 = por %p101, %p102
    %p104 = scmp.ne.s32.totalorder %s90, %s91
    %p105 = scmp.eq.s32.totalorder %s15, 1
    %p106 = por %p104, %p105
    %p108 = scmp.ne.s32.totalorder %s91, %s107
    %p109 = scmp.eq.s32.totalorder %s15, 0
    %p110 = por %p108, %p109
    %p111 = scmp.le.s32.totalorder 1, %s9
    %p112 = scmp.lt.s32.totalorder %s9, 3
    %p113 = pnand %p111, %p112
    %p114 = pneg %p113
    // Predicated region
    $region9: #{tpu_custom_call.1} parent=5 // pred_check
      _
    $region10: #{tpu_custom_call.1} parent=5 // pred_check_branch
      %116 = sbr.rel (%p113) target = $region12
    $region11: #{tpu_custom_call.1} parent=5 // pred_region
      %s117 = ssub.s32 %s9, 1
      // Predicated region
      $region13: #{tpu_custom_call.1} parent=11 // pred_check
        %p118 = pneg %p56
      $region14: #{tpu_custom_call.1} parent=11 // pred_check_branch
        %120 = sbr.rel (%p118) target = $region16
      $region15: #{tpu_custom_call.1} parent=11 // pred_region
        _
      $region16: #{tpu_custom_call.1} parent=11 // pred_fallthru
        _
      // Predicated region
      $region17: #{tpu_custom_call.1} parent=11 // pred_check
        %p121 = pneg %p77
      $region18: #{tpu_custom_call.1} parent=11 // pred_check_branch
        %123 = sbr.rel (%p121) target = $region20
      $region19: #{tpu_custom_call.1} parent=11 // pred_region
        _
      $region20: #{tpu_custom_call.1} parent=11 // pred_fallthru
        _
    $region12: #{tpu_custom_call.1} parent=5 // pred_fallthru
      _
    %p124 = scmp.lt.s32.totalorder %s9, 2
    // Predicated region
    $region21: #{tpu_custom_call.1} parent=5 // pred_check
      %p125 = pneg %p124
    $region22: #{tpu_custom_call.1} parent=5 // pred_check_branch
      %127 = sbr.rel (%p125) target = $region24
    $region23: #{tpu_custom_call.1} parent=5 // pred_region
      // Predicated region
      $region25: #{tpu_custom_call.1} parent=23 // pred_check
        %p128 = pneg %p29
      $region26: #{tpu_custom_call.1} parent=23 // pred_check_branch
        %130 = sbr.rel (%p128) target = $region28
      $region27: #{tpu_custom_call.1} parent=23 // pred_region
        %p131 = scmp.lt.s32.totalorder %s9, 1
        %s132 = scalar_select %p131, %s9, 1
        %s133 = smul.addr %s132, 14
        %s134 = smul.addr %s133, 4
        %s135 = scalar_lea.vmem %s0, %s134
      $region28: #{tpu_custom_call.1} parent=23 // pred_fallthru
        _
    $region24: #{tpu_custom_call.1} parent=5 // pred_fallthru
      _
    %p136 = scmp.le.s32.totalorder 1, %s9
    %p137 = scmp.lt.s32.totalorder %s9, 3
    %p138 = pnand %p136, %p137
    %p139 = pneg %p138
    // Predicated region
    $region29: #{tpu_custom_call.1} parent=5 // pred_check
      _
    $region30: #{tpu_custom_call.1} parent=5 // pred_check_branch
      %141 = sbr.rel (%p138) target = $region32
    $region31: #{tpu_custom_call.1} parent=5 // pred_region
      %s142 = ssub.s32 %s9, 1
      %p143 = scmp.lt.s32.totalorder %s14, 1
      %s144 = scalar_select %p143, %s14, 1
      %s145 = smul.addr %s144, 14
      %s146 = smul.addr %s145, 4
      %s147 = scalar_lea.vmem %s0, %s146
      %p148 = pneg %p35
      %p149 = pneg %p32
      %p150 = pneg %p56
      %p151 = pneg %p53
      %p152 = pneg %p77
      %p153 = pneg %p74
      %p154 = pneg %p103
      %p155 = pneg %p100
      %p156 = scmp.lt.s32.totalorder %s14, 1
      %s157 = scalar_select %p156, %s14, 1
      %s158 = smul.addr %s157, 10
      %s159 = smul.addr %s158, 8
      %s160 = scalar_lea.vmem %s3, %s159
      %p161 = scmp.lt.s32.totalorder %s14, 1
      %s162 = scalar_select %p161, %s14, 1
      %s163 = smul.addr %s162, 14
      %s164 = smul.addr %s163, 4
      %s165 = scalar_lea.vmem %s0, %s164
      %p166 = scmp.lt.s32.totalorder %s14, 1
      %s167 = scalar_select %p166, %s14, 1
      %s168 = smul.addr %s167, 10
      %s169 = smul.addr %s168, 8
      %s170 = scalar_lea.vmem %s3, %s169
      %v172 = vld [vmem:[%s165] sm:$0xf]
      %v173 = vld [vmem:[%s165 + $0x4] sm:$0xf]
      %v174 = vld [vmem:[%s165 + $0x8] sm:$0xf]
      %v175 = vld [vmem:[%s165 + $0xc] sm:$0xf]
      %v176 = vld [vmem:[%s165 + $0x10] sm:$0xf]
      %v177 = vld [vmem:[%s165 + $0x14] sm:$0xf]
      %v178 = vld [vmem:[%s165 + $0x18] sm:$0xf]
      %v179 = vld [vmem:[%s165 + $0x1c] sm:$0xf]
      %v180 = vld [vmem:[%s165 + $0x20] sm:$0xf]
      %v181 = vld [vmem:[%s165 + $0x24] sm:$0xf]
      %v182 = vld [vmem:[%s165 + $0x28] sm:$0xf]
      %v183 = vld [vmem:[%s165 + $0x2c] sm:$0xf]
      %v184 = vld [vmem:[%s165 + $0x30] sm:$0xf]
      %v185 = vld [vmem:[%s165 + $0x34] sm:$0x7]
      %v186 = vld [vmem:[%s1] sm:$0x3]
      %v201 = vunpack.c.l.b16 %v172
      %v202 = vunpack.c.l.b16 %v173
      %v203 = vunpack.c.l.b16 %v174
      %v204 = vunpack.c.l.b16 %v175
      %v205 = vunpack.c.l.b16 %v176
      %v206 = vunpack.c.l.b16 %v177
      %v207 = vunpack.c.l.b16 %v178
      %v208 = vunpack.c.l.b16 %v179
      %v209 = vunpack.c.l.b16 %v180
      %v210 = vunpack.c.l.b16 %v181
      %v211 = vunpack.c.l.b16 %v182
      %v212 = vunpack.c.l.b16 %v183
      %v213 = vunpack.c.l.b16 %v184
      %v214 = vunpack.c.l.b16 %v185
      %v215 = vpack.c.b16 %v202, %v201
      %v216 = vpack.c.b16 %v204, %v203
      %v217 = vpack.c.b16 %v206, %v205
      %v218 = vpack.c.b16 %v208, %v207
      %v219 = vpack.c.b16 %v210, %v209
      %v220 = vpack.c.b16 %v212, %v211
      %v221 = vpack.c.b16 %v214, %v213
      %vm222 = vcmask 31744
      %v224 = vsel %vm222, %v215, 0
      %v227 = vsel %vm222, %v216, 0
      %v230 = vsel %vm222, %v217, 0
      %v233 = vsel %vm222, %v218, 0
      %v236 = vsel %vm222, %v219, 0
      %v239 = vsel %vm222, %v220, 0
      %v242 = vsel %vm222, %v221, 0
      %vm244 = vcmask 1041408
      %v246 = vsel %vm244, %v186, 0
      %248 = vmatprep.subr.bf16.mxu0 0
      %249 = vmatpush1.bf16.msra.mxu0 0
      %250 = vmatprep.subr.bf16.mxu0 0
      %251 = vmatpush1.bf16.msra.mxu0 0
      %252 = vmatprep.subr.bf16.mxu0 0
      %253 = vmatpush1.bf16.msra.mxu0 0
      %254 = vmatprep.subr.bf16.mxu0 0
      %255 = vmatpush1.bf16.msra.mxu0 0
      %256 = vmatprep.subr.bf16.mxu0 0
      %257 = vmatpush1.bf16.msra.mxu0 0
      %258 = vmatprep.subr.bf16.mxu0 0
      %259 = vmatpush1.bf16.msra.mxu0 0
      %260 = vmatprep.subr.bf16.mxu0 0
      %261 = vmatpush1.bf16.msra.mxu0 0
      %262 = vmatprep.subr.bf16.mxu0 0
      %263 = vmatpush1.bf16.msra.mxu0 %v246
      %264 = vmatprep.subr.bf16.mxu0 0
      %265 = vmatpush2.bf16.msra.mxu0 0
      %266 = vmatprep.subr.bf16.mxu0 0
      %267 = vmatpush2.bf16.msra.mxu0 0
      %268 = vmatprep.subr.bf16.mxu0 0
      %269 = vmatpush2.bf16.msra.mxu0 0
      %270 = vmatprep.subr.bf16.mxu0 0
      %271 = vmatpush2.bf16.msra.mxu0 0
      %272 = vmatprep.subr.bf16.mxu0 0
      %273 = vmatpush2.bf16.msra.mxu0 0
      %274 = vmatprep.subr.bf16.mxu0 0
      %275 = vmatpush2.bf16.msra.mxu0 0
      %276 = vmatprep.subr.bf16.mxu0 0
      %277 = vmatpush2.bf16.msra.mxu0 0
      %278 = vmatprep.subr.bf16.mxu0 0
      %279 = vmatpush2.bf16.msra.mxu0 0
      %280 = vmatprep.mubr.bf16.mxu0 0
      %281 = vmatmul.mubr.bf16.gmra.mxu0 %v224
      %v282 = vpop.f32.mrf.mxu0
      %v283 = vadd.f32 0.0, %v282
      %v284 = vpop.f32.mrf.mxu0
      %v285 = vpop.f32.mrf.mxu0
      %v286 = vadd.f32 0.0, %v285
      %v287 = vpop.f32.mrf.mxu0
      %288 = vmatprep.mubr.bf16.mxu0 0
      %289 = vmatmul.mubr.bf16.gmra.mxu0 %v227
      %v290 = vpop.f32.mrf.mxu0
      %v291 = vadd.f32 0.0, %v290
      %v292 = vpop.f32.mrf.mxu0
      %v293 = vpop.f32.mrf.mxu0
      %v294 = vadd.f32 0.0, %v293
      %v295 = vpop.f32.mrf.mxu0
      %296 = vmatprep.mubr.bf16.mxu0 0
      %297 = vmatmul.mubr.bf16.gmra.mxu0 %v230
      %v298 = vpop.f32.mrf.mxu0
      %v299 = vadd.f32 0.0, %v298
      %v300 = vpop.f32.mrf.mxu0
      %v301 = vpop.f32.mrf.mxu0
      %v302 = vadd.f32 0.0, %v301
      %v303 = vpop.f32.mrf.mxu0
      %304 = vmatprep.mubr.bf16.mxu0 0
      %305 = vmatmul.mubr.bf16.gmra.mxu0 %v233
      %v306 = vpop.f32.mrf.mxu0
      %v307 = vadd.f32 0.0, %v306
      %v308 = vpop.f32.mrf.mxu0
      %v309 = vpop.f32.mrf.mxu0
      %v310 = vadd.f32 0.0, %v309
      %v311 = vpop.f32.mrf.mxu0
      %312 = vmatprep.mubr.bf16.mxu0 0
      %313 = vmatmul.mubr.bf16.gmra.mxu0 %v236
      %v314 = vpop.f32.mrf.mxu0
      %v315 = vadd.f32 0.0, %v314
      %v316 = vpop.f32.mrf.mxu0
      %v317 = vpop.f32.mrf.mxu0
      %v318 = vadd.f32 0.0, %v317
      %v319 = vpop.f32.mrf.mxu0
      %320 = vmatprep.mubr.bf16.mxu0 0
      %321 = vmatmul.mubr.bf16.gmra.mxu0 %v239
      %v322 = vpop.f32.mrf.mxu0
      %v323 = vadd.f32 0.0, %v322
      %v324 = vpop.f32.mrf.mxu0
      %v325 = vpop.f32.mrf.mxu0
      %v326 = vadd.f32 0.0, %v325
      %v327 = vpop.f32.mrf.mxu0
      %328 = vmatprep.mubr.bf16.mxu0 0
      %329 = vmatmul.mubr.bf16.gmra.mxu0 %v242
      %v330 = vpop.f32.mrf.mxu0
      %v331 = vadd.f32 0.0, %v330
      %v332 = vpop.f32.mrf.mxu0
      %v333 = vpop.f32.mrf.mxu0
      %v334 = vpop.f32.mrf.mxu0
      %335 = vdwg.mxu0
      %v336 = vld [vmem:[%s2] sm:$0x1]
      %v338 = vlaneseq
      %v339 = vshrl.u32 %v338, 7
      %v340 = vsub.s32 0, %v339
      %v341 = vrot.slane %v336, %v340
      %v343 = vadd.f32 %v341, %v283
      %v344 = vadd.f32 %v341, %v286
      %v345 = vadd.f32 %v341, %v291
      %v346 = vadd.f32 %v341, %v294
      %v347 = vadd.f32 %v341, %v299
      %v348 = vadd.f32 %v341, %v302
      %v349 = vadd.f32 %v341, %v307
      %v350 = vadd.f32 %v341, %v310
      %v351 = vadd.f32 %v341, %v315
      %v352 = vadd.f32 %v341, %v318
      %vm364 = vcmask 1046528
      %v365 = vrot.slane %v283, 1
      %v366 = vrot.slane %v286, 1
      %v367 = vsel %vm364, %v365, %v366
      %v368 = vrot.slane %v291, 1
      %v369 = vsel %vm364, %v366, %v368
      %v370 = vrot.slane %v294, 1
      %v371 = vsel %vm364, %v368, %v370
      %v372 = vrot.slane %v299, 1
      %v373 = vsel %vm364, %v370, %v372
      %v374 = vrot.slane %v302, 1
      %v375 = vsel %vm364, %v372, %v374
      %v376 = vrot.slane %v307, 1
      %v377 = vsel %vm364, %v374, %v376
      %v378 = vrot.slane %v310, 1
      %v379 = vsel %vm364, %v376, %v378
      %v380 = vrot.slane %v315, 1
      %v381 = vsel %vm364, %v378, %v380
      %v382 = vrot.slane %v318, 1
      %v383 = vsel %vm364, %v380, %v382
      %v384 = vrot.slane %v323, 1
      %v385 = vsel %vm364, %v382, %v384
      %386 = vrot.lane.b32.xlu0 %v367, 124
      %v387 = vpop.permute.xlu0 %386
      %388 = vrot.lane.b32.xlu0 %v369, 124
      %v389 = vpop.permute.xlu0 %388
      %390 = vrot.lane.b32.xlu0 %v371, 124
      %v391 = vpop.permute.xlu0 %390
      %392 = vrot.lane.b32.xlu0 %v373, 124
      %v393 = vpop.permute.xlu0 %392
      %394 = vrot.lane.b32.xlu0 %v375, 124
      %v395 = vpop.permute.xlu0 %394
      %396 = vrot.lane.b32.xlu0 %v377, 124
      %v397 = vpop.permute.xlu0 %396
      %398 = vrot.lane.b32.xlu0 %v379, 124
      %v399 = vpop.permute.xlu0 %398
      %400 = vrot.lane.b32.xlu0 %v381, 124
      %v401 = vpop.permute.xlu0 %400
      %402 = vrot.lane.b32.xlu0 %v383, 124
      %v403 = vpop.permute.xlu0 %402
      %404 = vrot.lane.b32.xlu0 %v385, 124
      %v405 = vpop.permute.xlu0 %404
      %v416 = vadd.f32 %v343, %v387
      %v417 = vadd.f32 %v344, %v389
      %v418 = vadd.f32 %v345, %v391
      %v419 = vadd.f32 %v346, %v393
      %v420 = vadd.f32 %v347, %v395
      %v421 = vadd.f32 %v348, %v397
      %v422 = vadd.f32 %v349, %v399
      %v423 = vadd.f32 %v350, %v401
      %v424 = vadd.f32 %v351, %v403
      %v425 = vadd.f32 %v352, %v405
      %vm427 = vcmask 1045504
      %v428 = vrot.slane %v286, 2
      %v429 = vrot.slane %v291, 2
      %v430 = vsel %vm427, %v428, %v429
      %v431 = vrot.slane %v294, 2
      %v432 = vsel %vm427, %v429, %v431
      %v433 = vrot.slane %v299, 2
      %v434 = vsel %vm427, %v431, %v433
      %v435 = vrot.slane %v302, 2
      %v436 = vsel %vm427, %v433, %v435
      %v437 = vrot.slane %v307, 2
      %v438 = vsel %vm427, %v435, %v437
      %v439 = vrot.slane %v310, 2
      %v440 = vsel %vm427, %v437, %v439
      %v441 = vrot.slane %v315, 2
      %v442 = vsel %vm427, %v439, %v441
      %v443 = vrot.slane %v318, 2
      %v444 = vsel %vm427, %v441, %v443
      %v445 = vrot.slane %v323, 2
      %v446 = vsel %vm427, %v443, %v445
      %v447 = vrot.slane %v326, 2
      %v448 = vsel %vm427, %v445, %v447
      %449 = vrot.lane.b32.xlu0 %v430, 120
      %v450 = vpop.permute.xlu0 %449
      %451 = vrot.lane.b32.xlu0 %v432, 120
      %v452 = vpop.permute.xlu0 %451
      %453 = vrot.lane.b32.xlu0 %v434, 120
      %v454 = vpop.permute.xlu0 %453
      %455 = vrot.lane.b32.xlu0 %v436, 120
      %v456 = vpop.permute.xlu0 %455
      %457 = vrot.lane.b32.xlu0 %v438, 120
      %v458 = vpop.permute.xlu0 %457
      %459 = vrot.lane.b32.xlu0 %v440, 120
      %v460 = vpop.permute.xlu0 %459
      %461 = vrot.lane.b32.xlu0 %v442, 120
      %v462 = vpop.permute.xlu0 %461
      %463 = vrot.lane.b32.xlu0 %v444, 120
      %v464 = vpop.permute.xlu0 %463
      %465 = vrot.lane.b32.xlu0 %v446, 120
      %v466 = vpop.permute.xlu0 %465
      %467 = vrot.lane.b32.xlu0 %v448, 120
      %v468 = vpop.permute.xlu0 %467
      %v479 = vadd.f32 %v416, %v450
      %v480 = vadd.f32 %v417, %v452
      %v481 = vadd.f32 %v418, %v454
      %v482 = vadd.f32 %v419, %v456
      %v483 = vadd.f32 %v420, %v458
      %v484 = vadd.f32 %v421, %v460
      %v485 = vadd.f32 %v422, %v462
      %v486 = vadd.f32 %v423, %v464
      %v487 = vadd.f32 %v424, %v466
      %v488 = vadd.f32 %v425, %v468
      %vm489 = vcmask 1044480
      %v490 = vrot.slane %v286, 3
      %v491 = vrot.slane %v291, 3
      %v492 = vsel %vm489, %v490, %v491
      %v493 = vrot.slane %v294, 3
      %v494 = vsel %vm489, %v491, %v493
      %v495 = vrot.slane %v299, 3
      %v496 = vsel %vm489, %v493, %v495
      %v497 = vrot.slane %v302, 3
      %v498 = vsel %vm489, %v495, %v497
      %v499 = vrot.slane %v307, 3
      %v500 = vsel %vm489, %v497, %v499
      %v501 = vrot.slane %v310, 3
      %v502 = vsel %vm489, %v499, %v501
      %v503 = vrot.slane %v315, 3
      %v504 = vsel %vm489, %v501, %v503
      %v505 = vrot.slane %v318, 3
      %v506 = vsel %vm489, %v503, %v505
      %v507 = vrot.slane %v323, 3
      %v508 = vsel %vm489, %v505, %v507
      %v509 = vrot.slane %v326, 3
      %v510 = vsel %vm489, %v507, %v509
      %511 = vrot.lane.b32.xlu0 %v492, 116
      %v512 = vpop.permute.xlu0 %511
      %513 = vrot.lane.b32.xlu0 %v494, 116
      %v514 = vpop.permute.xlu0 %513
      %515 = vrot.lane.b32.xlu0 %v496, 116
      %v516 = vpop.permute.xlu0 %515
      %517 = vrot.lane.b32.xlu0 %v498, 116
      %v518 = vpop.permute.xlu0 %517
      %519 = vrot.lane.b32.xlu0 %v500, 116
      %v520 = vpop.permute.xlu0 %519
      %521 = vrot.lane.b32.xlu0 %v502, 116
      %v522 = vpop.permute.xlu0 %521
      %523 = vrot.lane.b32.xlu0 %v504, 116
      %v524 = vpop.permute.xlu0 %523
      %525 = vrot.lane.b32.xlu0 %v506, 116
      %v526 = vpop.permute.xlu0 %525
      %527 = vrot.lane.b32.xlu0 %v508, 116
      %v528 = vpop.permute.xlu0 %527
      %529 = vrot.lane.b32.xlu0 %v510, 116
      %v530 = vpop.permute.xlu0 %529
      %v541 = vadd.f32 %v479, %v512
      %v542 = vadd.f32 %v480, %v514
      %v543 = vadd.f32 %v481, %v516
      %v544 = vadd.f32 %v482, %v518
      %v545 = vadd.f32 %v483, %v520
      %v546 = vadd.f32 %v484, %v522
      %v547 = vadd.f32 %v485, %v524
      %v548 = vadd.f32 %v486, %v526
      %v549 = vadd.f32 %v487, %v528
      %v550 = vadd.f32 %v488, %v530
      %v551 = vmul.f32 %v541, 0.2
      %v552 = vmul.f32 %v542, 0.2
      %v553 = vmul.f32 %v543, 0.2
      %v554 = vmul.f32 %v544, 0.2
      %v555 = vmul.f32 %v545, 0.2
      %v556 = vmul.f32 %v546, 0.2
      %v557 = vmul.f32 %v547, 0.2
      %v558 = vmul.f32 %v548, 0.2
      %v559 = vmul.f32 %v549, 0.2
      %v560 = vmul.f32 %v550, 0.2
      %v561 = vmax.f32 %v541, %v551
      %v562 = vmax.f32 %v542, %v552
      %v563 = vmax.f32 %v543, %v553
      %v564 = vmax.f32 %v544, %v554
      %v565 = vmax.f32 %v545, %v555
      %v566 = vmax.f32 %v546, %v556
      %v567 = vmax.f32 %v547, %v557
      %v568 = vmax.f32 %v548, %v558
      %v569 = vmax.f32 %v549, %v559
      %v570 = vmax.f32 %v550, %v560
      %571 = vrot.lane.b32.xlu0 %v367, 112
      %v572 = vpop.permute.xlu0 %571
      %573 = vrot.lane.b32.xlu0 %v369, 112
      %v574 = vpop.permute.xlu0 %573
      %575 = vrot.lane.b32.xlu0 %v371, 112
      %v576 = vpop.permute.xlu0 %575
      %577 = vrot.lane.b32.xlu0 %v373, 112
      %v578 = vpop.permute.xlu0 %577
      %579 = vrot.lane.b32.xlu0 %v375, 112
      %v580 = vpop.permute.xlu0 %579
      %581 = vrot.lane.b32.xlu0 %v377, 112
      %v582 = vpop.permute.xlu0 %581
      %583 = vrot.lane.b32.xlu0 %v379, 112
      %v584 = vpop.permute.xlu0 %583
      %585 = vrot.lane.b32.xlu0 %v381, 112
      %v586 = vpop.permute.xlu0 %585
      %587 = vrot.lane.b32.xlu0 %v383, 112
      %v588 = vpop.permute.xlu0 %587
      %589 = vrot.lane.b32.xlu0 %v385, 112
      %v590 = vpop.permute.xlu0 %589
      %v601 = vadd.f32 %v341, %v572
      %v602 = vadd.f32 %v341, %v574
      %v603 = vadd.f32 %v341, %v576
      %v604 = vadd.f32 %v341, %v578
      %v605 = vadd.f32 %v341, %v580
      %v606 = vadd.f32 %v341, %v582
      %v607 = vadd.f32 %v341, %v584
      %v608 = vadd.f32 %v341, %v586
      %v609 = vadd.f32 %v341, %v588
      %v610 = vadd.f32 %v341, %v590
      %v611 = vrot.slane %v283, 2
      %v612 = vsel %vm427, %v611, %v428
      %613 = vrot.lane.b32.xlu0 %v612, 108
      %v614 = vpop.permute.xlu0 %613
      %615 = vrot.lane.b32.xlu0 %v430, 108
      %v616 = vpop.permute.xlu0 %615
      %617 = vrot.lane.b32.xlu0 %v432, 108
      %v618 = vpop.permute.xlu0 %617
      %619 = vrot.lane.b32.xlu0 %v434, 108
      %v620 = vpop.permute.xlu0 %619
      %621 = vrot.lane.b32.xlu0 %v436, 108
      %v622 = vpop.permute.xlu0 %621
      %623 = vrot.lane.b32.xlu0 %v438, 108
      %v624 = vpop.permute.xlu0 %623
      %625 = vrot.lane.b32.xlu0 %v440, 108
      %v626 = vpop.permute.xlu0 %625
      %627 = vrot.lane.b32.xlu0 %v442, 108
      %v628 = vpop.permute.xlu0 %627
      %629 = vrot.lane.b32.xlu0 %v444, 108
      %v630 = vpop.permute.xlu0 %629
      %631 = vrot.lane.b32.xlu0 %v446, 108
      %v632 = vpop.permute.xlu0 %631
      %v643 = vadd.f32 %v601, %v614
      %v644 = vadd.f32 %v602, %v616
      %v645 = vadd.f32 %v603, %v618
      %v646 = vadd.f32 %v604, %v620
      %v647 = vadd.f32 %v605, %v622
      %v648 = vadd.f32 %v606, %v624
      %v649 = vadd.f32 %v607, %v626
      %v650 = vadd.f32 %v608, %v628
      %v651 = vadd.f32 %v609, %v630
      %v652 = vadd.f32 %v610, %v632
      %653 = vrot.lane.b32.xlu0 %v492, 104
      %v654 = vpop.permute.xlu0 %653
      %655 = vrot.lane.b32.xlu0 %v494, 104
      %v656 = vpop.permute.xlu0 %655
      %657 = vrot.lane.b32.xlu0 %v496, 104
      %v658 = vpop.permute.xlu0 %657
      %659 = vrot.lane.b32.xlu0 %v498, 104
      %v660 = vpop.permute.xlu0 %659
      %661 = vrot.lane.b32.xlu0 %v500, 104
      %v662 = vpop.permute.xlu0 %661
      %663 = vrot.lane.b32.xlu0 %v502, 104
      %v664 = vpop.permute.xlu0 %663
      %665 = vrot.lane.b32.xlu0 %v504, 104
      %v666 = vpop.permute.xlu0 %665
      %667 = vrot.lane.b32.xlu0 %v506, 104
      %v668 = vpop.permute.xlu0 %667
      %669 = vrot.lane.b32.xlu0 %v508, 104
      %v670 = vpop.permute.xlu0 %669
      %671 = vrot.lane.b32.xlu0 %v510, 104
      %v672 = vpop.permute.xlu0 %671
      %v683 = vadd.f32 %v643, %v654
      %v684 = vadd.f32 %v644, %v656
      %v685 = vadd.f32 %v645, %v658
      %v686 = vadd.f32 %v646, %v660
      %v687 = vadd.f32 %v647, %v662
      %v688 = vadd.f32 %v648, %v664
      %v689 = vadd.f32 %v649, %v666
      %v690 = vadd.f32 %v650, %v668
      %v691 = vadd.f32 %v651, %v670
      %v692 = vadd.f32 %v652, %v672
      %vm693 = vcmask 1043456
      %v694 = vrot.slane %v286, 4
      %v695 = vrot.slane %v291, 4
      %v696 = vsel %vm693, %v694, %v695
      %v697 = vrot.slane %v294, 4
      %v698 = vsel %vm693, %v695, %v697
      %v699 = vrot.slane %v299, 4
      %v700 = vsel %vm693, %v697, %v699
      %v701 = vrot.slane %v302, 4
      %v702 = vsel %vm693, %v699, %v701
      %v703 = vrot.slane %v307, 4
      %v704 = vsel %vm693, %v701, %v703
      %v705 = vrot.slane %v310, 4
      %v706 = vsel %vm693, %v703, %v705
      %v707 = vrot.slane %v315, 4
      %v708 = vsel %vm693, %v705, %v707
      %v709 = vrot.slane %v318, 4
      %v710 = vsel %vm693, %v707, %v709
      %v711 = vrot.slane %v323, 4
      %v712 = vsel %vm693, %v709, %v711
      %v713 = vrot.slane %v326, 4
      %v714 = vsel %vm693, %v711, %v713
      %715 = vrot.lane.b32.xlu0 %v696, 100
      %v716 = vpop.permute.xlu0 %715
      %717 = vrot.lane.b32.xlu0 %v698, 100
      %v718 = vpop.permute.xlu0 %717
      %719 = vrot.lane.b32.xlu0 %v700, 100
      %v720 = vpop.permute.xlu0 %719
      %721 = vrot.lane.b32.xlu0 %v702, 100
      %v722 = vpop.permute.xlu0 %721
      %723 = vrot.lane.b32.xlu0 %v704, 100
      %v724 = vpop.permute.xlu0 %723
      %725 = vrot.lane.b32.xlu0 %v706, 100
      %v726 = vpop.permute.xlu0 %725
      %727 = vrot.lane.b32.xlu0 %v708, 100
      %v728 = vpop.permute.xlu0 %727
      %729 = vrot.lane.b32.xlu0 %v710, 100
      %v730 = vpop.permute.xlu0 %729
      %731 = vrot.lane.b32.xlu0 %v712, 100
      %v732 = vpop.permute.xlu0 %731
      %733 = vrot.lane.b32.xlu0 %v714, 100
      %v734 = vpop.permute.xlu0 %733
      %v745 = vadd.f32 %v683, %v716
      %v746 = vadd.f32 %v684, %v718
      %v747 = vadd.f32 %v685, %v720
      %v748 = vadd.f32 %v686, %v722
      %v749 = vadd.f32 %v687, %v724
      %v750 = vadd.f32 %v688, %v726
      %v751 = vadd.f32 %v689, %v728
      %v752 = vadd.f32 %v690, %v730
      %v753 = vadd.f32 %v691, %v732
      %v754 = vadd.f32 %v692, %v734
      %v755 = vmul.f32 %v745, 0.2
      %v756 = vmul.f32 %v746, 0.2
      %v757 = vmul.f32 %v747, 0.2
      %v758 = vmul.f32 %v748, 0.2
      %v759 = vmul.f32 %v749, 0.2
      %v760 = vmul.f32 %v750, 0.2
      %v761 = vmul.f32 %v751, 0.2
      %v762 = vmul.f32 %v752, 0.2
      %v763 = vmul.f32 %v753, 0.2
      %v764 = vmul.f32 %v754, 0.2
      %v765 = vmax.f32 %v745, %v755
      %v766 = vmax.f32 %v746, %v756
      %v767 = vmax.f32 %v747, %v757
      %v768 = vmax.f32 %v748, %v758
      %v769 = vmax.f32 %v749, %v759
      %v770 = vmax.f32 %v750, %v760
      %v771 = vmax.f32 %v751, %v761
      %v772 = vmax.f32 %v752, %v762
      %v773 = vmax.f32 %v753, %v763
      %v774 = vmax.f32 %v754, %v764
      %775 = vrot.lane.b32.xlu0 %v430, 96
      %v776 = vpop.permute.xlu0 %775
      %777 = vrot.lane.b32.xlu0 %v432, 96
      %v778 = vpop.permute.xlu0 %777
      %779 = vrot.lane.b32.xlu0 %v434, 96
      %v780 = vpop.permute.xlu0 %779
      %781 = vrot.lane.b32.xlu0 %v436, 96
      %v782 = vpop.permute.xlu0 %781
      %783 = vrot.lane.b32.xlu0 %v438, 96
      %v784 = vpop.permute.xlu0 %783
      %785 = vrot.lane.b32.xlu0 %v440, 96
      %v786 = vpop.permute.xlu0 %785
      %787 = vrot.lane.b32.xlu0 %v442, 96
      %v788 = vpop.permute.xlu0 %787
      %789 = vrot.lane.b32.xlu0 %v444, 96
      %v790 = vpop.permute.xlu0 %789
      %791 = vrot.lane.b32.xlu0 %v446, 96
      %v792 = vpop.permute.xlu0 %791
      %793 = vrot.lane.b32.xlu0 %v448, 96
      %v794 = vpop.permute.xlu0 %793
      %v805 = vadd.f32 %v341, %v776
      %v806 = vadd.f32 %v341, %v778
      %v807 = vadd.f32 %v341, %v780
      %v808 = vadd.f32 %v341, %v782
      %v809 = vadd.f32 %v341, %v784
      %v810 = vadd.f32 %v341, %v786
      %v811 = vadd.f32 %v341, %v788
      %v812 = vadd.f32 %v341, %v790
      %v813 = vadd.f32 %v341, %v792
      %v814 = vadd.f32 %v341, %v794
      %815 = vrot.lane.b32.xlu0 %v492, 92
      %v816 = vpop.permute.xlu0 %815
      %817 = vrot.lane.b32.xlu0 %v494, 92
      %v818 = vpop.permute.xlu0 %817
      %819 = vrot.lane.b32.xlu0 %v496, 92
      %v820 = vpop.permute.xlu0 %819
      %821 = vrot.lane.b32.xlu0 %v498, 92
      %v822 = vpop.permute.xlu0 %821
      %823 = vrot.lane.b32.xlu0 %v500, 92
      %v824 = vpop.permute.xlu0 %823
      %825 = vrot.lane.b32.xlu0 %v502, 92
      %v826 = vpop.permute.xlu0 %825
      %827 = vrot.lane.b32.xlu0 %v504, 92
      %v828 = vpop.permute.xlu0 %827
      %829 = vrot.lane.b32.xlu0 %v506, 92
      %v830 = vpop.permute.xlu0 %829
      %831 = vrot.lane.b32.xlu0 %v508, 92
      %v832 = vpop.permute.xlu0 %831
      %833 = vrot.lane.b32.xlu0 %v510, 92
      %v834 = vpop.permute.xlu0 %833
      %v845 = vadd.f32 %v805, %v816
      %v846 = vadd.f32 %v806, %v818
      %v847 = vadd.f32 %v807, %v820
      %v848 = vadd.f32 %v808, %v822
      %v849 = vadd.f32 %v809, %v824
      %v850 = vadd.f32 %v810, %v826
      %v851 = vadd.f32 %v811, %v828
      %v852 = vadd.f32 %v812, %v830
      %v853 = vadd.f32 %v813, %v832
      %v854 = vadd.f32 %v814, %v834
      %v856 = vrot.slane %v331, 4
      %v857 = vsel %vm693, %v713, %v856
      %858 = vrot.lane.b32.xlu0 %v698, 88
      %v859 = vpop.permute.xlu0 %858
      %860 = vrot.lane.b32.xlu0 %v700, 88
      %v861 = vpop.permute.xlu0 %860
      %862 = vrot.lane.b32.xlu0 %v702, 88
      %v863 = vpop.permute.xlu0 %862
      %864 = vrot.lane.b32.xlu0 %v704, 88
      %v865 = vpop.permute.xlu0 %864
      %866 = vrot.lane.b32.xlu0 %v706, 88
      %v867 = vpop.permute.xlu0 %866
      %868 = vrot.lane.b32.xlu0 %v708, 88
      %v869 = vpop.permute.xlu0 %868
      %870 = vrot.lane.b32.xlu0 %v710, 88
      %v871 = vpop.permute.xlu0 %870
      %872 = vrot.lane.b32.xlu0 %v712, 88
      %v873 = vpop.permute.xlu0 %872
      %874 = vrot.lane.b32.xlu0 %v714, 88
      %v875 = vpop.permute.xlu0 %874
      %876 = vrot.lane.b32.xlu0 %v857, 88
      %v877 = vpop.permute.xlu0 %876
      %v888 = vadd.f32 %v845, %v859
      %v889 = vadd.f32 %v846, %v861
      %v890 = vadd.f32 %v847, %v863
      %v891 = vadd.f32 %v848, %v865
      %v892 = vadd.f32 %v849, %v867
      %v893 = vadd.f32 %v850, %v869
      %v894 = vadd.f32 %v851, %v871
      %v895 = vadd.f32 %v852, %v873
      %v896 = vadd.f32 %v853, %v875
      %v897 = vadd.f32 %v854, %v877
      %vm898 = vcmask 1042432
      %v899 = vrot.slane %v291, 5
      %v900 = vrot.slane %v294, 5
      %v901 = vsel %vm898, %v899, %v900
      %v902 = vrot.slane %v299, 5
      %v903 = vsel %vm898, %v900, %v902
      %v904 = vrot.slane %v302, 5
      %v905 = vsel %vm898, %v902, %v904
      %v906 = vrot.slane %v307, 5
      %v907 = vsel %vm898, %v904, %v906
      %v908 = vrot.slane %v310, 5
      %v909 = vsel %vm898, %v906, %v908
      %v910 = vrot.slane %v315, 5
      %v911 = vsel %vm898, %v908, %v910
      %v912 = vrot.slane %v318, 5
      %v913 = vsel %vm898, %v910, %v912
      %v914 = vrot.slane %v323, 5
      %v915 = vsel %vm898, %v912, %v914
      %v916 = vrot.slane %v326, 5
      %v917 = vsel %vm898, %v914, %v916
      %v918 = vrot.slane %v331, 5
      %v919 = vsel %vm898, %v916, %v918
      %920 = vrot.lane.b32.xlu0 %v901, 84
      %v921 = vpop.permute.xlu0 %920
      %922 = vrot.lane.b32.xlu0 %v903, 84
      %v923 = vpop.permute.xlu0 %922
      %924 = vrot.lane.b32.xlu0 %v905, 84
      %v925 = vpop.permute.xlu0 %924
      %926 = vrot.lane.b32.xlu0 %v907, 84
      %v927 = vpop.permute.xlu0 %926
      %928 = vrot.lane.b32.xlu0 %v909, 84
      %v929 = vpop.permute.xlu0 %928
      %930 = vrot.lane.b32.xlu0 %v911, 84
      %v931 = vpop.permute.xlu0 %930
      %932 = vrot.lane.b32.xlu0 %v913, 84
      %v933 = vpop.permute.xlu0 %932
      %934 = vrot.lane.b32.xlu0 %v915, 84
      %v935 = vpop.permute.xlu0 %934
      %936 = vrot.lane.b32.xlu0 %v917, 84
      %v937 = vpop.permute.xlu0 %936
      %938 = vrot.lane.b32.xlu0 %v919, 84
      %v939 = vpop.permute.xlu0 %938
      %v950 = vadd.f32 %v888, %v921
      %v951 = vadd.f32 %v889, %v923
      %v952 = vadd.f32 %v890, %v925
      %v953 = vadd.f32 %v891, %v927
      %v954 = vadd.f32 %v892, %v929
      %v955 = vadd.f32 %v893, %v931
      %v956 = vadd.f32 %v894, %v933
      %v957 = vadd.f32 %v895, %v935
      %v958 = vadd.f32 %v896, %v937
      %v959 = vadd.f32 %v897, %v939
      %v960 = vmul.f32 %v950, 0.2
      %v961 = vmul.f32 %v951, 0.2
      %v962 = vmul.f32 %v952, 0.2
      %v963 = vmul.f32 %v953, 0.2
      %v964 = vmul.f32 %v954, 0.2
      %v965 = vmul.f32 %v955, 0.2
      %v966 = vmul.f32 %v956, 0.2
      %v967 = vmul.f32 %v957, 0.2
      %v968 = vmul.f32 %v958, 0.2
      %v969 = vmul.f32 %v959, 0.2
      %v970 = vmax.f32 %v950, %v960
      %v971 = vmax.f32 %v951, %v961
      %v972 = vmax.f32 %v952, %v962
      %v973 = vmax.f32 %v953, %v963
      %v974 = vmax.f32 %v954, %v964
      %v975 = vmax.f32 %v955, %v965
      %v976 = vmax.f32 %v956, %v966
      %v977 = vmax.f32 %v957, %v967
      %v978 = vmax.f32 %v958, %v968
      %v979 = vmax.f32 %v959, %v969
      %980 = vrot.lane.b32.xlu0 %v492, 80
      %v981 = vpop.permute.xlu0 %980
      %982 = vrot.lane.b32.xlu0 %v494, 80
      %v983 = vpop.permute.xlu0 %982
      %984 = vrot.lane.b32.xlu0 %v496, 80
      %v985 = vpop.permute.xlu0 %984
      %986 = vrot.lane.b32.xlu0 %v498, 80
      %v987 = vpop.permute.xlu0 %986
      %988 = vrot.lane.b32.xlu0 %v500, 80
      %v989 = vpop.permute.xlu0 %988
      %990 = vrot.lane.b32.xlu0 %v502, 80
      %v991 = vpop.permute.xlu0 %990
      %992 = vrot.lane.b32.xlu0 %v504, 80
      %v993 = vpop.permute.xlu0 %992
      %994 = vrot.lane.b32.xlu0 %v506, 80
      %v995 = vpop.permute.xlu0 %994
      %996 = vrot.lane.b32.xlu0 %v508, 80
      %v997 = vpop.permute.xlu0 %996
      %998 = vrot.lane.b32.xlu0 %v510, 80
      %v999 = vpop.permute.xlu0 %998
      %v1010 = vadd.f32 %v341, %v981
      %v1011 = vadd.f32 %v341, %v983
      %v1012 = vadd.f32 %v341, %v985
      %v1013 = vadd.f32 %v341, %v987
      %v1014 = vadd.f32 %v341, %v989
      %v1015 = vadd.f32 %v341, %v991
      %v1016 = vadd.f32 %v341, %v993
      %v1017 = vadd.f32 %v341, %v995
      %v1018 = vadd.f32 %v341, %v997
      %v1019 = vadd.f32 %v341, %v999
      %1020 = vrot.lane.b32.xlu0 %v696, 76
      %v1021 = vpop.permute.xlu0 %1020
      %1022 = vrot.lane.b32.xlu0 %v698, 76
      %v1023 = vpop.permute.xlu0 %1022
      %1024 = vrot.lane.b32.xlu0 %v700, 76
      %v1025 = vpop.permute.xlu0 %1024
      %1026 = vrot.lane.b32.xlu0 %v702, 76
      %v1027 = vpop.permute.xlu0 %1026
      %1028 = vrot.lane.b32.xlu0 %v704, 76
      %v1029 = vpop.permute.xlu0 %1028
      %1030 = vrot.lane.b32.xlu0 %v706, 76
      %v1031 = vpop.permute.xlu0 %1030
      %1032 = vrot.lane.b32.xlu0 %v708, 76
      %v1033 = vpop.permute.xlu0 %1032
      %1034 = vrot.lane.b32.xlu0 %v710, 76
      %v1035 = vpop.permute.xlu0 %1034
      %1036 = vrot.lane.b32.xlu0 %v712, 76
      %v1037 = vpop.permute.xlu0 %1036
      %1038 = vrot.lane.b32.xlu0 %v714, 76
      %v1039 = vpop.permute.xlu0 %1038
      %v1050 = vadd.f32 %v1010, %v1021
      %v1051 = vadd.f32 %v1011, %v1023
      %v1052 = vadd.f32 %v1012, %v1025
      %v1053 = vadd.f32 %v1013, %v1027
      %v1054 = vadd.f32 %v1014, %v1029
      %v1055 = vadd.f32 %v1015, %v1031
      %v1056 = vadd.f32 %v1016, %v1033
      %v1057 = vadd.f32 %v1017, %v1035
      %v1058 = vadd.f32 %v1018, %v1037
      %v1059 = vadd.f32 %v1019, %v1039
      %1060 = vrot.lane.b32.xlu0 %v901, 72
      %v1061 = vpop.permute.xlu0 %1060
      %1062 = vrot.lane.b32.xlu0 %v903, 72
      %v1063 = vpop.permute.xlu0 %1062
      %1064 = vrot.lane.b32.xlu0 %v905, 72
      %v1065 = vpop.permute.xlu0 %1064
      %1066 = vrot.lane.b32.xlu0 %v907, 72
      %v1067 = vpop.permute.xlu0 %1066
      %1068 = vrot.lane.b32.xlu0 %v909, 72
      %v1069 = vpop.permute.xlu0 %1068
      %1070 = vrot.lane.b32.xlu0 %v911, 72
      %v1071 = vpop.permute.xlu0 %1070
      %1072 = vrot.lane.b32.xlu0 %v913, 72
      %v1073 = vpop.permute.xlu0 %1072
      %1074 = vrot.lane.b32.xlu0 %v915, 72
      %v1075 = vpop.permute.xlu0 %1074
      %1076 = vrot.lane.b32.xlu0 %v917, 72
      %v1077 = vpop.permute.xlu0 %1076
      %1078 = vrot.lane.b32.xlu0 %v919, 72
      %v1079 = vpop.permute.xlu0 %1078
      %v1090 = vadd.f32 %v1050, %v1061
      %v1091 = vadd.f32 %v1051, %v1063
      %v1092 = vadd.f32 %v1052, %v1065
      %v1093 = vadd.f32 %v1053, %v1067
      %v1094 = vadd.f32 %v1054, %v1069
      %v1095 = vadd.f32 %v1055, %v1071
      %v1096 = vadd.f32 %v1056, %v1073
      %v1097 = vadd.f32 %v1057, %v1075
      %v1098 = vadd.f32 %v1058, %v1077
      %v1099 = vadd.f32 %v1059, %v1079
      %v1100 = vrot.slane %v291, 6
      %v1101 = vrot.slane %v294, 6
      %v1102 = vsel %vm244, %v1100, %v1101
      %v1103 = vrot.slane %v299, 6
      %v1104 = vsel %vm244, %v1101, %v1103
      %v1105 = vrot.slane %v302, 6
      %v1106 = vsel %vm244, %v1103, %v1105
      %v1107 = vrot.slane %v307, 6
      %v1108 = vsel %vm244, %v1105, %v1107
      %v1109 = vrot.slane %v310, 6
      %v1110 = vsel %vm244, %v1107, %v1109
      %v1111 = vrot.slane %v315, 6
      %v1112 = vsel %vm244, %v1109, %v1111
      %v1113 = vrot.slane %v318, 6
      %v1114 = vsel %vm244, %v1111, %v1113
      %v1115 = vrot.slane %v323, 6
      %v1116 = vsel %vm244, %v1113, %v1115
      %v1117 = vrot.slane %v326, 6
      %v1118 = vsel %vm244, %v1115, %v1117
      %v1119 = vrot.slane %v331, 6
      %v1120 = vsel %vm244, %v1117, %v1119
      %1121 = vrot.lane.b32.xlu0 %v1102, 68
      %v1122 = vpop.permute.xlu0 %1121
      %1123 = vrot.lane.b32.xlu0 %v1104, 68
      %v1124 = vpop.permute.xlu0 %1123
      %1125 = vrot.lane.b32.xlu0 %v1106, 68
      %v1126 = vpop.permute.xlu0 %1125
      %1127 = vrot.lane.b32.xlu0 %v1108, 68
      %v1128 = vpop.permute.xlu0 %1127
      %1129 = vrot.lane.b32.xlu0 %v1110, 68
      %v1130 = vpop.permute.xlu0 %1129
      %1131 = vrot.lane.b32.xlu0 %v1112, 68
      %v1132 = vpop.permute.xlu0 %1131
      %1133 = vrot.lane.b32.xlu0 %v1114, 68
      %v1134 = vpop.permute.xlu0 %1133
      %1135 = vrot.lane.b32.xlu0 %v1116, 68
      %v1136 = vpop.permute.xlu0 %1135
      %1137 = vrot.lane.b32.xlu0 %v1118, 68
      %v1138 = vpop.permute.xlu0 %1137
      %1139 = vrot.lane.b32.xlu0 %v1120, 68
      %v1140 = vpop.permute.xlu0 %1139
      %v1151 = vadd.f32 %v1090, %v1122
      %v1152 = vadd.f32 %v1091, %v1124
      %v1153 = vadd.f32 %v1092, %v1126
      %v1154 = vadd.f32 %v1093, %v1128
      %v1155 = vadd.f32 %v1094, %v1130
      %v1156 = vadd.f32 %v1095, %v1132
      %v1157 = vadd.f32 %v1096, %v1134
      %v1158 = vadd.f32 %v1097, %v1136
      %v1159 = vadd.f32 %v1098, %v1138
      %v1160 = vadd.f32 %v1099, %v1140
      %v1161 = vmul.f32 %v1151, 0.2
      %v1162 = vmul.f32 %v1152, 0.2
      %v1163 = vmul.f32 %v1153, 0.2
      %v1164 = vmul.f32 %v1154, 0.2
      %v1165 = vmul.f32 %v1155, 0.2
      %v1166 = vmul.f32 %v1156, 0.2
      %v1167 = vmul.f32 %v1157, 0.2
      %v1168 = vmul.f32 %v1158, 0.2
      %v1169 = vmul.f32 %v1159, 0.2
      %v1170 = vmul.f32 %v1160, 0.2
      %v1171 = vmax.f32 %v1151, %v1161
      %v1172 = vmax.f32 %v1152, %v1162
      %v1173 = vmax.f32 %v1153, %v1163
      %v1174 = vmax.f32 %v1154, %v1164
      %v1175 = vmax.f32 %v1155, %v1165
      %v1176 = vmax.f32 %v1156, %v1166
      %v1177 = vmax.f32 %v1157, %v1167
      %v1178 = vmax.f32 %v1158, %v1168
      %v1179 = vmax.f32 %v1159, %v1169
      %v1180 = vmax.f32 %v1160, %v1170
      %1191 = vrot.lane.b32.xlu0 %v765, 4
      %v1192 = vpop.permute.xlu0 %1191
      %1193 = vrot.lane.b32.xlu0 %v766, 4
      %v1194 = vpop.permute.xlu0 %1193
      %1195 = vrot.lane.b32.xlu0 %v767, 4
      %v1196 = vpop.permute.xlu0 %1195
      %1197 = vrot.lane.b32.xlu0 %v768, 4
      %v1198 = vpop.permute.xlu0 %1197
      %1199 = vrot.lane.b32.xlu0 %v769, 4
      %v1200 = vpop.permute.xlu0 %1199
      %1201 = vrot.lane.b32.xlu0 %v770, 4
      %v1202 = vpop.permute.xlu0 %1201
      %1203 = vrot.lane.b32.xlu0 %v771, 4
      %v1204 = vpop.permute.xlu0 %1203
      %1205 = vrot.lane.b32.xlu0 %v772, 4
      %v1206 = vpop.permute.xlu0 %1205
      %1207 = vrot.lane.b32.xlu0 %v773, 4
      %v1208 = vpop.permute.xlu0 %1207
      %1209 = vrot.lane.b32.xlu0 %v774, 4
      %v1210 = vpop.permute.xlu0 %1209
      %1231 = vrot.lane.b32.xlu0 %v970, 8
      %v1232 = vpop.permute.xlu0 %1231
      %1233 = vrot.lane.b32.xlu0 %v971, 8
      %v1234 = vpop.permute.xlu0 %1233
      %1235 = vrot.lane.b32.xlu0 %v972, 8
      %v1236 = vpop.permute.xlu0 %1235
      %1237 = vrot.lane.b32.xlu0 %v973, 8
      %v1238 = vpop.permute.xlu0 %1237
      %1239 = vrot.lane.b32.xlu0 %v974, 8
      %v1240 = vpop.permute.xlu0 %1239
      %1241 = vrot.lane.b32.xlu0 %v975, 8
      %v1242 = vpop.permute.xlu0 %1241
      %1243 = vrot.lane.b32.xlu0 %v976, 8
      %v1244 = vpop.permute.xlu0 %1243
      %1245 = vrot.lane.b32.xlu0 %v977, 8
      %v1246 = vpop.permute.xlu0 %1245
      %1247 = vrot.lane.b32.xlu0 %v978, 8
      %v1248 = vpop.permute.xlu0 %1247
      %1249 = vrot.lane.b32.xlu0 %v979, 8
      %v1250 = vpop.permute.xlu0 %1249
      %1271 = vrot.lane.b32.xlu0 %v1171, 12
      %v1272 = vpop.permute.xlu0 %1271
      %1273 = vrot.lane.b32.xlu0 %v1172, 12
      %v1274 = vpop.permute.xlu0 %1273
      %1275 = vrot.lane.b32.xlu0 %v1173, 12
      %v1276 = vpop.permute.xlu0 %1275
      %1277 = vrot.lane.b32.xlu0 %v1174, 12
      %v1278 = vpop.permute.xlu0 %1277
      %1279 = vrot.lane.b32.xlu0 %v1175, 12
      %v1280 = vpop.permute.xlu0 %1279
      %1281 = vrot.lane.b32.xlu0 %v1176, 12
      %v1282 = vpop.permute.xlu0 %1281
      %1283 = vrot.lane.b32.xlu0 %v1177, 12
      %v1284 = vpop.permute.xlu0 %1283
      %1285 = vrot.lane.b32.xlu0 %v1178, 12
      %v1286 = vpop.permute.xlu0 %1285
      %1287 = vrot.lane.b32.xlu0 %v1179, 12
      %v1288 = vpop.permute.xlu0 %1287
      %1289 = vrot.lane.b32.xlu0 %v1180, 12
      %v1290 = vpop.permute.xlu0 %1289
      %v1301 = vsel %vm222, %v561, %v1192
      %v1302 = vsel %vm222, %v562, %v1194
      %v1303 = vsel %vm222, %v563, %v1196
      %v1304 = vsel %vm222, %v564, %v1198
      %v1305 = vsel %vm222, %v565, %v1200
      %v1306 = vsel %vm222, %v566, %v1202
      %v1307 = vsel %vm222, %v567, %v1204
      %v1308 = vsel %vm222, %v568, %v1206
      %v1309 = vsel %vm222, %v569, %v1208
      %v1310 = vsel %vm222, %v570, %v1210
      %vm1311 = vcmask 64512
      %v1312 = vsel %vm1311, %v1301, %v1232
      %v1313 = vsel %vm1311, %v1302, %v1234
      %v1314 = vsel %vm1311, %v1303, %v1236
      %v1315 = vsel %vm1311, %v1304, %v1238
      %v1316 = vsel %vm1311, %v1305, %v1240
      %v1317 = vsel %vm1311, %v1306, %v1242
      %v1318 = vsel %vm1311, %v1307, %v1244
      %v1319 = vsel %vm1311, %v1308, %v1246
      %v1320 = vsel %vm1311, %v1309, %v1248
      %v1321 = vsel %vm1311, %v1310, %v1250
      %vm1322 = vcmask 97280
      %v1323 = vsel %vm1322, %v1312, %v1272
      %v1324 = vsel %vm1322, %v1313, %v1274
      %v1325 = vsel %vm1322, %v1314, %v1276
      %v1326 = vsel %vm1322, %v1315, %v1278
      %v1327 = vsel %vm1322, %v1316, %v1280
      %v1328 = vsel %vm1322, %v1317, %v1282
      %v1329 = vsel %vm1322, %v1318, %v1284
      %v1330 = vsel %vm1322, %v1319, %v1286
      %v1331 = vsel %vm1322, %v1320, %v1288
      %v1332 = vsel %vm1322, %v1321, %v1290
      %vm1333 = vcmask 130048
      %1334 = vst.msk [vmem:[%s170] sm:$0xff] %vm1333, %v1323
      %1335 = vst.msk [vmem:[%s170 + $0x8] sm:$0xff] %vm1333, %v1324
      %1336 = vst.msk [vmem:[%s170 + $0x10] sm:$0xff] %vm1333, %v1325
      %1337 = vst.msk [vmem:[%s170 + $0x18] sm:$0xff] %vm1333, %v1326
      %1338 = vst.msk [vmem:[%s170 + $0x20] sm:$0xff] %vm1333, %v1327
      %1339 = vst.msk [vmem:[%s170 + $0x28] sm:$0xff] %vm1333, %v1328
      %1340 = vst.msk [vmem:[%s170 + $0x30] sm:$0xff] %vm1333, %v1329
      %1341 = vst.msk [vmem:[%s170 + $0x38] sm:$0xff] %vm1333, %v1330
      %1342 = vst.msk [vmem:[%s170 + $0x40] sm:$0xff] %vm1333, %v1331
      %1343 = vst.msk [vmem:[%s170 + $0x48] sm:$0xff] %vm1333, %v1332
      %p1344 = scmp.lt.s32.totalorder %s14, 1
      %s1345 = scalar_select %p1344, %s14, 1
      %s1346 = smul.addr %s1345, 10
      %s1347 = smul.addr %s1346, 8
      %s1348 = scalar_lea.vmem %s3, %s1347
      // Predicated region
      $region33: #{tpu_custom_call.1} parent=31 // pred_check
        %p1349 = pneg %p100
      $region34: #{tpu_custom_call.1} parent=31 // pred_check_branch
        %1351 = sbr.rel (%p1349) target = $region36
      $region35: #{tpu_custom_call.1} parent=31 // pred_region
        _
      $region36: #{tpu_custom_call.1} parent=31 // pred_fallthru
        _
    $region32: #{tpu_custom_call.1} parent=5 // pred_fallthru
      _
    %p1352 = scmp.le.s32.totalorder 2, %s9
    // Predicated region
    $region37: #{tpu_custom_call.1} parent=5 // pred_check
      %p1353 = pneg %p1352
    $region38: #{tpu_custom_call.1} parent=5 // pred_check_branch
      %1355 = sbr.rel (%p1353) target = $region40
    $region39: #{tpu_custom_call.1} parent=5 // pred_region
      %s1356 = ssub.s32 %s9, 2
      // Predicated region
      $region41: #{tpu_custom_call.1} parent=39 // pred_check
        %p1357 = pneg %p106
      $region42: #{tpu_custom_call.1} parent=39 // pred_check_branch
        %1359 = sbr.rel (%p1357) target = $region44
      $region43: #{tpu_custom_call.1} parent=39 // pred_region
        %p1360 = scmp.lt.s32.totalorder %s15, 1
        %s1361 = scalar_select %p1360, %s15, 1
        %s1362 = smul.addr %s1361, 10
        %s1363 = smul.addr %s1362, 8
        %s1364 = scalar_lea.vmem %s3, %s1363
      $region44: #{tpu_custom_call.1} parent=39 // pred_fallthru
        _
    $region40: #{tpu_custom_call.1} parent=5 // pred_fallthru
      _
  $region6: #{tpu_custom_call.1} parent=0 // loop_footer
    %s13 = sadd.s32 1, %s9
  $region7: #{tpu_custom_call.1} parent=0 // loop_footer_branch
    %8 = sbr.rel target = $region3
  $region8: #{tpu_custom_call.1} parent=0 // loop_exit
    _

</llo_original>
